<compile_context>
chip_gen: v7x
topology: tpu7x:2x2x1
jax: 0.10.0
libtpu: 0.0.40
codegen_flags: <defaults>
</compile_context>

<pallas_src>
import jax
import jax.numpy as jnp
from jax.experimental import pallas as pl
from jax.experimental.pallas import tpu as pltpu


def _normalize_kernel(img_ref, scale_ref, bias_ref, out_ref):
    # img_ref/out_ref: (TM, TN) blocks; scale_ref/bias_ref: resident
    # (rows_padded, 1) f32 blocks. Pure FMA in f32 -> cast on store.
    tm = img_ref.shape[0]
    r0 = pl.multiple_of(pl.program_id(0) * tm, tm)
    s = scale_ref[pl.ds(r0, tm), :]
    b = bias_ref[pl.ds(r0, tm), :]
    out_ref[...] = (img_ref[...].astype(jnp.float32) * s + b).astype(out_ref.dtype)


def _round_up(x, m):
    return ((x + m - 1) // m) * m


def _round_down(x, m):
    return (x // m) * m


def _generation_budget():
    """(per-block byte budget, explicit vmem_limit_bytes or None)."""
    try:
        kind = jax.devices()[0].device_kind.lower()
    except Exception:
        kind = ""
    if "v7" in kind:
        # 64 MiB VMEM, 3.2 TB/s HBM: big tiles amortize the ~0.35us step
        # overhead; 4x double-buffered 8 MiB blocks need an explicit limit.
        return 8 << 20, 48 << 20
    if "v6" in kind:
        # 4 MiB blocks: 4x double-buffered = 16 MiB < 32 MiB default scope.
        return 4 << 20, None
    # v5e (16 MiB default scoped VMEM) and unknown chips: stay conservative.
    return 2 << 20, None


def normalization_forward(img_nchw, mean, std, *, donate_input=False):
    """img_nchw: (N, C, H, W); mean/std: (C,) arrays. Returns (N, C, H, W)."""
    N, C, H, W = img_nchw.shape
    rows = N * C
    cols = H * W
    dtype = img_nchw.dtype
    itemsize = jnp.dtype(dtype).itemsize

    img2d = img_nchw.reshape(rows, cols)

    budget_bytes, vmem_limit = _generation_budget()

    # dtype-aware sublane alignment: 8 for f32, 16 for bf16, 32 for int8/fp8.
    sublane_unit = max(8, 32 // itemsize)
    max_tm = 512  # multiple of 8/16/32
    TM = min(_round_up(rows, sublane_unit), max_tm)

    # Lane tile: multiple of 128, sized so TM*TN*itemsize ~= budget, never
    # larger than the (128-rounded) full lane extent.
    lane_budget = max(128, _round_down(budget_bytes // (TM * itemsize), 128))
    TN = max(128, min(_round_up(cols, 128), lane_budget))

    grid = (pl.cdiv(rows, TM), pl.cdiv(cols, TN))
    rows_padded = grid[0] * TM

    # (img - mean) / std  ==  img * (1/std) + (-mean/std); keep coeffs in f32,
    # zero-pad to rows_padded so the resident block covers every TM window.
    scale_c = 1.0 / std.astype(jnp.float32)
    bias_c = -mean.astype(jnp.float32) * scale_c
    pad = rows_padded - rows
    scale = jnp.pad(jnp.tile(scale_c, N), (0, pad)).reshape(rows_padded, 1)
    bias = jnp.pad(jnp.tile(bias_c, N), (0, pad)).reshape(rows_padded, 1)

    cp_kwargs = dict(dimension_semantics=("parallel", "parallel"))
    if vmem_limit is not None:
        cp_kwargs["vmem_limit_bytes"] = vmem_limit

    out2d = pl.pallas_call(
        _normalize_kernel,
        out_shape=jax.ShapeDtypeStruct((rows, cols), dtype),
        grid_spec=pltpu.PrefetchScalarGridSpec(
            num_scalar_prefetch=0,
            grid=grid,
            in_specs=[
                pl.BlockSpec((TM, TN), lambda i, j: (i, j)),
                # Resident: same block index for every grid step -> loaded once.
                pl.BlockSpec((rows_padded, 1), lambda i, j: (0, 0)),
                pl.BlockSpec((rows_padded, 1), lambda i, j: (0, 0)),
            ],
            out_specs=pl.BlockSpec((TM, TN), lambda i, j: (i, j)),
        ),
        compiler_params=pltpu.CompilerParams(**cp_kwargs),
        # Donating the image halves the HBM footprint; off by default because
        # callers (like the demo below) may still need the original input.
        input_output_aliases=({0: 0} if donate_input else {}),
    )(img2d, scale, bias)

    return out2d.reshape(N, C, H, W)


if __name__ == "__main__":
    key = jax.random.PRNGKey(0)

    # Deterministic "module parameters" (mirrors Normalization.__init__).
    mean = jnp.array([0.485, 0.456, 0.406], dtype=jnp.float32)
    std = jnp.array([0.229, 0.224, 0.225], dtype=jnp.float32)

    # Example input image batch, NCHW (small shapes; rows=6 and cols=256
    # exercise the cdiv/padded-edge-block path).
    img = jax.random.uniform(key, (2, 3, 16, 16), dtype=jnp.float32)

    out = normalization_forward(img, mean, std)
    out = jax.block_until_ready(out)

    # Reference check against plain-JAX semantics of the PyTorch forward.
    ref = (img - mean.reshape(-1, 1, 1)) / std.reshape(-1, 1, 1)
    assert out.shape == img.shape
    # Kernel uses precomputed 1/std (one extra rounding of the coefficient).
    assert jnp.allclose(out, ref, atol=1e-5, rtol=1e-5)

    print("KERNEL_OK")
</pallas_src>

<mosaic_0001>
module attributes {stable_mosaic.version = 11 : i64} {
  func.func @_normalize_kernel(%arg0: i32, %arg1: i32, %arg2: memref<8x256xf32, #tpu.memory_space<vmem>>, %arg3: memref<8x1xf32, #tpu.memory_space<vmem>>, %arg4: memref<8x1xf32, #tpu.memory_space<vmem>>, %arg5: memref<8x256xf32, #tpu.memory_space<vmem>>) attributes {dimension_semantics = [#tpu.dimension_semantics<parallel>, #tpu.dimension_semantics<parallel>], iteration_bounds = array<i64: 1, 1>, scalar_prefetch = 0 : i64, scratch_operands = 0 : i64, tpu.core_type = #tpu.core_type<tc>, window_params = [{transform_indices = @transform_0, window_bounds = array<i64: 8, 256>}, {pipeline_mode = #tpu.pipeline_mode<synchronous>, transform_indices = @transform_1, window_bounds = array<i64: 8, 1>}, {pipeline_mode = #tpu.pipeline_mode<synchronous>, transform_indices = @transform_2, window_bounds = array<i64: 8, 1>}, {transform_indices = @transform_3, window_bounds = array<i64: 8, 256>}]} {
    %c8_i32 = arith.constant 8 : i32
    %0 = arith.muli %arg0, %c8_i32 : i32
    %1 = tpu.assume_multiple %0, 8 : i32
    %2 = arith.index_cast %1 : i32 to index
    %c0 = arith.constant 0 : index
    %3 = vector.load %arg3[%2, %c0] : memref<8x1xf32, #tpu.memory_space<vmem>>, vector<8x1xf32>
    %4 = arith.index_cast %1 : i32 to index
    %c0_0 = arith.constant 0 : index
    %5 = vector.load %arg4[%4, %c0_0] : memref<8x1xf32, #tpu.memory_space<vmem>>, vector<8x1xf32>
    %c0_1 = arith.constant 0 : index
    %c0_2 = arith.constant 0 : index
    %6 = vector.load %arg2[%c0_1, %c0_2] : memref<8x256xf32, #tpu.memory_space<vmem>>, vector<8x256xf32>
    %7 = vector.broadcast %3 : vector<8x1xf32> to vector<8x256xf32>
    %8 = arith.mulf %6, %7 : vector<8x256xf32>
    %9 = vector.broadcast %5 : vector<8x1xf32> to vector<8x256xf32>
    %10 = arith.addf %8, %9 : vector<8x256xf32>
    %c0_3 = arith.constant 0 : index
    %c0_4 = arith.constant 0 : index
    %11 = vector.load %arg5[%c0_3, %c0_4] : memref<8x256xf32, #tpu.memory_space<vmem>>, vector<8x256xf32>
    tpu.vector_store %arg5[%c0_3, %c0_4], %10 {strides = array<i32>} : memref<8x256xf32, #tpu.memory_space<vmem>>, vector<8x256xf32>,
    return
  }
  func.func @transform_0(%arg0: i32, %arg1: i32) -> (i32, i32) {
    %c0_i32 = arith.constant 0 : i32
    return %arg0, %arg1 : i32, i32
  }
  func.func @transform_1(%arg0: i32, %arg1: i32) -> (i32, i32) {
    %c0_i32 = arith.constant 0 : i32
    %c0_i32_0 = arith.constant 0 : i32
    %c0_i32_1 = arith.constant 0 : i32
    return %c0_i32, %c0_i32_0 : i32, i32
  }
  func.func @transform_2(%arg0: i32, %arg1: i32) -> (i32, i32) {
    %c0_i32 = arith.constant 0 : i32
    %c0_i32_0 = arith.constant 0 : i32
    %c0_i32_1 = arith.constant 0 : i32
    return %c0_i32, %c0_i32_0 : i32, i32
  }
  func.func @transform_3(%arg0: i32, %arg1: i32) -> (i32, i32) {
    %c0_i32 = arith.constant 0 : i32
    return %arg0, %arg1 : i32, i32
  }
}

</mosaic_0001>

<llo_original>
// kernel: tpu_custom_call.1
$region0: #{tpu_custom_call.1}
  #allocation0 [shape = 'u32[]', space=smem, size = 0x4, offset = 0x4, fixed_abs, tag = 'smem constant byte address 0x4 - core index']
  #allocation1 [shape = 'u32[144,128]{1,0:T(1,128)}', space=vmem, size = 0x12000, scoped, tag = 'internal scratch']
  %s0 = inlined_call_operand.vmem [shape: f32[6,256], index: 0, kind: input, shape index: {}]
  %s1 = inlined_call_operand.vmem [shape: f32[8,1], index: 1, kind: input, shape index: {}]
  %s2 = inlined_call_operand.vmem [shape: f32[8,1], index: 2, kind: input, shape index: {}]
  %s3 = inlined_call_operand.hbm [shape: f32[6,256], index: 3, kind: output, shape index: {}]
  %s4 = sld [smem:[#allocation0]]
  $region22: #{tpu_custom_call.1} parent=0
    _
  %s6 = ssub.s32 1, %s4
  %s7 = scalar_select 0, %s6, %s4
  $region1: #{tpu_custom_call.1} parent=0
    #allocation2 [shape = 'u8[8192]{0}', space=vmem, size = 0x2000, scoped, tag = 'output window, operand 0, single buffered']
    #allocation3 [shape = 's32[1]{0}', space=sflag, size = 0x4, scoped, tag = 'scoped memory for tpu_custom_call.1']
    %8 = vsyncpa [#allocation3], 0
    // Predicated region
    $region2: #{tpu_custom_call.1} parent=1 // pred_check
      _
    $region3: #{tpu_custom_call.1} parent=1 // pred_check_branch
      %10 = sbr.rel (0) target = $region5
    $region4: #{tpu_custom_call.1} parent=1 // pred_region
      _
    $region5: #{tpu_custom_call.1} parent=1 // pred_fallthru
      _
    // Predicated region
    $region6: #{tpu_custom_call.1} parent=1 // pred_check
      _
    $region7: #{tpu_custom_call.1} parent=1 // pred_check_branch
      %12 = sbr.rel (0) target = $region9
    $region8: #{tpu_custom_call.1} parent=1 // pred_region
      _
    $region9: #{tpu_custom_call.1} parent=1 // pred_fallthru
      _
    // Predicated region
    $region10: #{tpu_custom_call.1} parent=1 // pred_check
      _
    $region11: #{tpu_custom_call.1} parent=1 // pred_check_branch
      %14 = sbr.rel (0) target = $region13
    $region12: #{tpu_custom_call.1} parent=1 // pred_region
      _
    $region13: #{tpu_custom_call.1} parent=1 // pred_fallthru
      _
    %s15 = smul.u32 0, 8
    %s16 = scalar_lea.vmem %s1, %s15
    %v17 = vld [vmem:[%s16] sm:$0xff]
    %s18 = scalar_lea.vmem %s2, %s15
    %v19 = vld [vmem:[%s18] sm:$0xff]
    %v20 = vld [vmem:[%s0] sm:$0xff]
    %v21 = vld [vmem:[%s0 + $0x8] sm:$0xff]
    %23 = vset.pattern.permute.xlu0 0
    %24 = vperm.xlu0 %23, %v17
    %v25 = vpop.permute.xlu0 %24
    %v27 = vmul.f32 %v20, %v25
    %v28 = vmul.f32 %v21, %v25
    %30 = vset.pattern.permute.xlu0 0
    %31 = vperm.xlu0 %30, %v19
    %v32 = vpop.permute.xlu0 %31
    %v34 = vadd.f32 %v27, %v32
    %v35 = vadd.f32 %v28, %v32
    %36 = vst [vmem:[#allocation2] sm:$0xff] %v34
    %37 = vst [vmem:[#allocation2 + $0x8] sm:$0xff] %v35
    // Predicated region
    $region14: #{tpu_custom_call.1} parent=1 // pred_check
      _
    $region15: #{tpu_custom_call.1} parent=1 // pred_check_branch
      %39 = sbr.rel (0) target = $region17
    $region16: #{tpu_custom_call.1} parent=1 // pred_region
      %s41 = ssub.s32 256, 256
      %42 = vsyncadd [#allocation3], %s41
      %s44 = sshll.u32 [#allocation2], 4
      %s45 = int_to_ptr.vmem [resolvable:$true] %s44
      %47 = dma.vmem_to_hbm [thread:$0]  %s45, 256, %s3, [#allocation3]
    $region17: #{tpu_custom_call.1} parent=1 // pred_fallthru
      _
    // Predicated region
    $region18: #{tpu_custom_call.1} parent=1 // pred_check
      _
    $region19: #{tpu_custom_call.1} parent=1 // pred_check_branch
      %49 = sbr.rel (0) target = $region21
    $region20: #{tpu_custom_call.1} parent=1 // pred_region
      %50 = dma.done [#allocation3], 256
    $region21: #{tpu_custom_call.1} parent=1 // pred_fallthru
      _
    %51 = vsyncpa [#allocation3], 1

</llo_original>
